<compile_context>
chip_gen: v6e
topology: v6e:2x2x1
jax: 0.10.0
libtpu: 0.0.40
codegen_flags: <defaults>
</compile_context>

<pallas_src>
import jax
import jax.numpy as jnp
from jax.experimental import pallas as pl
from jax.experimental.pallas import tpu as pltpu


def _round_up(x, m):
    return ((x + m - 1) // m) * m


# ---------------------------------------------------------------------------
# Kernels
# ---------------------------------------------------------------------------

def _linear_bias_kernel(x_ref, w_ref, b_ref, o_ref):
    # Single K step: whole reduction dim resident -> compute + bias + store.
    o_ref[...] = (jnp.dot(x_ref[...], w_ref[...],
                          preferred_element_type=jnp.float32)
                  + b_ref[...]).astype(o_ref.dtype)


def _linear_bias_acc_kernel(x_ref, w_ref, b_ref, o_ref, acc_ref):
    # General case: K split over last ("arbitrary") grid axis, f32 accumulator.
    k = pl.program_id(2)

    @pl.when(k == 0)
    def _():
        acc_ref[...] = jnp.zeros_like(acc_ref)

    acc_ref[...] += jnp.dot(x_ref[...], w_ref[...],
                            preferred_element_type=jnp.float32)

    @pl.when(k == pl.num_programs(2) - 1)
    def _():
        o_ref[...] = (acc_ref[...] + b_ref[...]).astype(o_ref.dtype)


# ---------------------------------------------------------------------------
# Tiled linear: out[M, N] = x2d[M, K] @ w_t[K, N] + bias[N]
# ---------------------------------------------------------------------------

def _tiled_linear(x2d, w_t, bias, *, tm=512, tn=512, tk=1024):
    M, K = x2d.shape
    K2, N = w_t.shape
    assert K == K2 and bias.shape == (N,)
    out_dtype = x2d.dtype

    # N: zero-pad only the (small) weight & bias to a lane multiple so output
    # stores are lane-dense; slice the output along N at the end.
    Np = _round_up(N, 128)
    tn = min(tn, Np)
    if Np != N:
        w_t = jnp.pad(w_t, ((0, 0), (0, Np - N)))
    b2d = jnp.pad(bias, (0, Np - N)).reshape(1, Np)

    # M: never pad the activation. Use a cdiv grid; garbage rows of the last
    # partial block only feed output rows whose stores are masked out.
    tm = min(tm, _round_up(M, 8))
    grid_m = pl.cdiv(M, tm)
    grid_n = Np // tn

    cost = pl.CostEstimate(
        flops=2 * M * Np * K,
        transcendentals=0,
        bytes_accessed=(x2d.size + w_t.size) * x2d.dtype.itemsize
                       + M * Np * jnp.dtype(out_dtype).itemsize)

    if K <= tk:
        # Common PatchTST case: K = D*P fits in a single tile.
        out = pl.pallas_call(
            _linear_bias_kernel,
            out_shape=jax.ShapeDtypeStruct((M, Np), out_dtype),
            grid_spec=pltpu.PrefetchScalarGridSpec(
                num_scalar_prefetch=0,
                grid=(grid_m, grid_n),
                in_specs=[
                    pl.BlockSpec((tm, K), lambda i, j: (i, 0)),   # x tile
                    pl.BlockSpec((K, tn), lambda i, j: (0, j)),   # w^T tile
                    pl.BlockSpec((1, tn), lambda i, j: (0, j)),   # bias tile
                ],
                out_specs=pl.BlockSpec((tm, tn), lambda i, j: (i, j)),
            ),
            compiler_params=pltpu.CompilerParams(
                dimension_semantics=("parallel", "parallel"),
                vmem_limit_bytes=32 * 1024 * 1024),
            cost_estimate=cost,
        )(x2d, w_t, b2d)
    else:
        # Large-K fallback: pad K on both operands (keeps the K edge exactly
        # zero -> no NaN/Inf pollution of the accumulator).
        tk = min(tk, _round_up(K, 128))
        Kp = _round_up(K, tk)
        if Kp != K:
            x2d = jnp.pad(x2d, ((0, 0), (0, Kp - K)))
            w_t = jnp.pad(w_t, ((0, Kp - K), (0, 0)))
        out = pl.pallas_call(
            _linear_bias_acc_kernel,
            out_shape=jax.ShapeDtypeStruct((M, Np), out_dtype),
            grid_spec=pltpu.PrefetchScalarGridSpec(
                num_scalar_prefetch=0,
                grid=(grid_m, grid_n, Kp // tk),
                in_specs=[
                    pl.BlockSpec((tm, tk), lambda i, j, k: (i, k)),   # x tile
                    pl.BlockSpec((tk, tn), lambda i, j, k: (k, j)),   # w^T tile
                    pl.BlockSpec((1, tn), lambda i, j, k: (0, j)),    # bias tile
                ],
                out_specs=pl.BlockSpec((tm, tn), lambda i, j, k: (i, j)),
                scratch_shapes=[pltpu.VMEM((tm, tn), jnp.float32)],
            ),
            compiler_params=pltpu.CompilerParams(
                dimension_semantics=("parallel", "parallel", "arbitrary"),
                vmem_limit_bytes=32 * 1024 * 1024),
            cost_estimate=cost,
        )(x2d, w_t, b2d)

    if Np != N:
        out = out[:, :N]
    return out


# ---------------------------------------------------------------------------
# Module-equivalent wrapper
# ---------------------------------------------------------------------------

def flatten_linear(x, weight, bias, dropout_p=0.1, training=False):
    """JAX/Pallas equivalent of PatchTST `Flatten.forward` (inference mode).

    x:      [B, C, D, P]
    weight: [output_size, input_size]  (PyTorch nn.Linear layout; input_size == D*P)
    bias:   [output_size]
    """
    if training and dropout_p > 0.0:
        # TODO(synk): training-mode dropout (scaled Bernoulli mask via
        # pltpu.prng_seed / prng_random_bits) not implemented; eval mode only.
        raise NotImplementedError(
            "training-mode dropout not implemented; call with training=False")

    B, C, D, P = x.shape
    K = D * P
    N = weight.shape[0]
    assert weight.shape == (N, K)

    x2d = x.reshape(B * C, K)   # Flatten(start_dim=-2) + merge of batch dims.
    # NOTE: for repeated inference, store the weight K-major at load time so
    # this transpose is paid once (under jit it constant-folds for fixed weights).
    w_t = weight.T
    out2d = _tiled_linear(x2d, w_t, bias)
    return out2d.reshape(B, C, N)


if __name__ == "__main__":
    key = jax.random.PRNGKey(0)

    # --- Case 1: typical PatchTST shapes (single-K-step fast path) ---------
    B, C, D, P = 2, 4, 8, 4
    input_size = D * P          # 32
    output_size = 16

    kx, kw, kb, kx2, kw2, kb2 = jax.random.split(key, 6)

    x = jax.random.normal(kx, (B, C, D, P), dtype=jnp.float32)
    bound = 1.0 / jnp.sqrt(jnp.float32(input_size))
    weight = jax.random.uniform(kw, (output_size, input_size),
                                dtype=jnp.float32, minval=-bound, maxval=bound)
    bias = jax.random.uniform(kb, (output_size,),
                              dtype=jnp.float32, minval=-bound, maxval=bound)

    out = jax.block_until_ready(flatten_linear(x, weight, bias))
    ref = x.reshape(B, C, input_size) @ weight.T + bias
    assert out.shape == (B, C, output_size)
    assert jnp.allclose(out, ref, atol=1e-5, rtol=1e-5)

    # --- Case 2: large K exercising the accumulator fallback path ----------
    D2, P2 = 40, 32             # K = 1280 > 1024 -> multi-K grid
    in2, out2_sz = D2 * P2, 24
    x_big = jax.random.normal(kx2, (B, C, D2, P2), dtype=jnp.float32)
    bound2 = 1.0 / jnp.sqrt(jnp.float32(in2))
    w_big = jax.random.uniform(kw2, (out2_sz, in2), dtype=jnp.float32,
                               minval=-bound2, maxval=bound2)
    b_big = jax.random.uniform(kb2, (out2_sz,), dtype=jnp.float32,
                               minval=-bound2, maxval=bound2)

    out_big = jax.block_until_ready(flatten_linear(x_big, w_big, b_big))
    ref_big = x_big.reshape(B, C, in2) @ w_big.T + b_big
    assert out_big.shape == (B, C, out2_sz)
    assert jnp.allclose(out_big, ref_big, atol=1e-4, rtol=1e-4)

    print("KERNEL_OK")
</pallas_src>

<mosaic_0001>
module attributes {stable_mosaic.version = 11 : i64} {
  func.func @_linear_bias_kernel(%arg0: i32, %arg1: i32, %arg2: memref<8x32xf32, #tpu.memory_space<vmem>>, %arg3: memref<32x128xf32, #tpu.memory_space<vmem>>, %arg4: memref<1x128xf32, #tpu.memory_space<vmem>>, %arg5: memref<8x128xf32, #tpu.memory_space<vmem>>) attributes {dimension_semantics = [#tpu.dimension_semantics<parallel>, #tpu.dimension_semantics<parallel>], iteration_bounds = array<i64: 1, 1>, scalar_prefetch = 0 : i64, scratch_operands = 0 : i64, tpu.core_type = #tpu.core_type<tc>, window_params = [{transform_indices = @transform_0, window_bounds = array<i64: 8, 32>}, {transform_indices = @transform_1, window_bounds = array<i64: 32, 128>}, {transform_indices = @transform_2, window_bounds = array<i64: 1, 128>}, {transform_indices = @transform_3, window_bounds = array<i64: 8, 128>}]} {
    %c0 = arith.constant 0 : index
    %c0_0 = arith.constant 0 : index
    %0 = vector.load %arg2[%c0, %c0_0] : memref<8x32xf32, #tpu.memory_space<vmem>>, vector<8x32xf32>
    %c0_1 = arith.constant 0 : index
    %c0_2 = arith.constant 0 : index
    %1 = vector.load %arg3[%c0_1, %c0_2] : memref<32x128xf32, #tpu.memory_space<vmem>>, vector<32x128xf32>
    %cst = arith.constant dense<0.000000e+00> : vector<8x128xf32>
    %2 = tpu.matmul %0, %1, %cst {dimension_numbers = #tpu.dot_dimension_numbers<[1], [0], [0], [1], [0, 0, 1, 1], [], []>} : vector<8x32xf32>, vector<32x128xf32>, vector<8x128xf32> -> vector<8x128xf32>
    %c0_3 = arith.constant 0 : index
    %c0_4 = arith.constant 0 : index
    %3 = vector.load %arg4[%c0_3, %c0_4] : memref<1x128xf32, #tpu.memory_space<vmem>>, vector<1x128xf32>
    %4 = vector.broadcast %3 : vector<1x128xf32> to vector<8x128xf32>
    %5 = arith.addf %2, %4 : vector<8x128xf32>
    %c0_5 = arith.constant 0 : index
    %c0_6 = arith.constant 0 : index
    %6 = vector.load %arg5[%c0_5, %c0_6] : memref<8x128xf32, #tpu.memory_space<vmem>>, vector<8x128xf32>
    tpu.vector_store %arg5[%c0_5, %c0_6], %5 {strides = array<i32>} : memref<8x128xf32, #tpu.memory_space<vmem>>, vector<8x128xf32>,
    return
  }
  func.func @transform_0(%arg0: i32, %arg1: i32) -> (i32, i32) {
    %c0_i32 = arith.constant 0 : i32
    %c0_i32_0 = arith.constant 0 : i32
    return %arg0, %c0_i32 : i32, i32
  }
  func.func @transform_1(%arg0: i32, %arg1: i32) -> (i32, i32) {
    %c0_i32 = arith.constant 0 : i32
    %c0_i32_0 = arith.constant 0 : i32
    return %c0_i32, %arg1 : i32, i32
  }
  func.func @transform_2(%arg0: i32, %arg1: i32) -> (i32, i32) {
    %c0_i32 = arith.constant 0 : i32
    %c0_i32_0 = arith.constant 0 : i32
    return %c0_i32, %arg1 : i32, i32
  }
  func.func @transform_3(%arg0: i32, %arg1: i32) -> (i32, i32) {
    %c0_i32 = arith.constant 0 : i32
    return %arg0, %arg1 : i32, i32
  }
}

</mosaic_0001>

<llo_original>
// kernel: tpu_custom_call.1
$region0: #{tpu_custom_call.1}
  #allocation0 [shape = 'u32[]', space=smem, size = 0x4, offset = 0x4, fixed_abs, tag = 'smem constant byte address 0x4 - core index']
  #allocation1 [shape = 'u32[144,128]{1,0:T(1,128)}', space=vmem, size = 0x12000, scoped, tag = 'internal scratch']
  %s0 = inlined_call_operand.hbm [shape: f32[8,32], index: 0, kind: input, shape index: {}]
  %s1 = inlined_call_operand.hbm [shape: f32[32,128], index: 1, kind: input, shape index: {}]
  %s2 = inlined_call_operand.vmem [shape: f32[1,128], index: 2, kind: input, shape index: {}]
  %s3 = inlined_call_operand.hbm [shape: f32[8,128], index: 3, kind: output, shape index: {}]
  %s4 = sld [smem:[#allocation0]]
  $region30: #{tpu_custom_call.1} parent=0
    _
  %s6 = ssub.s32 1, %s4
  %s7 = scalar_select 0, %s6, %s4
  $region1: #{tpu_custom_call.1} parent=0
    #allocation2 [shape = 'u8[4096]{0}', space=vmem, size = 0x1000, scoped, tag = 'input window, operand 0, single buffered']
    #allocation3 [shape = 's32[1]{0}', space=sflag, size = 0x4, scoped, tag = 'scoped memory for tpu_custom_call.1']
    #allocation4 [shape = 's32[1]{0}', space=sflag, size = 0x4, scoped, tag = 'scoped memory for tpu_custom_call.1']
    #allocation5 [shape = 'u8[16384]{0}', space=vmem, size = 0x4000, scoped, tag = 'input window, operand 1, single buffered']
    #allocation6 [shape = 's32[1]{0}', space=sflag, size = 0x4, scoped, tag = 'scoped memory for tpu_custom_call.1']
    #allocation7 [shape = 'u8[4096]{0}', space=vmem, size = 0x1000, scoped, tag = 'output window, operand 0, single buffered']
    %8 = vsyncpa [#allocation3], 0
    %9 = vsyncpa [#allocation6], 0
    %10 = vsyncpa [#allocation4], 0
    // Predicated region
    $region2: #{tpu_custom_call.1} parent=1 // pred_check
      _
    $region3: #{tpu_custom_call.1} parent=1 // pred_check_branch
      %12 = sbr.rel (0) target = $region5
    $region4: #{tpu_custom_call.1} parent=1 // pred_region
      %s14 = ssub.s32 128, 128
      %15 = vsyncadd [#allocation3], %s14
      %s17 = sshll.u32 [#allocation2], 4
      %s18 = int_to_ptr.vmem [resolvable:$true] %s17
      %20 = dma.hbm_to_vmem [thread:$0]  %s0, 128, %s18, [#allocation3]
    $region5: #{tpu_custom_call.1} parent=1 // pred_fallthru
      _
    // Predicated region
    $region6: #{tpu_custom_call.1} parent=1 // pred_check
      _
    $region7: #{tpu_custom_call.1} parent=1 // pred_check_branch
      %22 = sbr.rel (0) target = $region9
    $region8: #{tpu_custom_call.1} parent=1 // pred_region
      %s24 = ssub.s32 512, 512
      %25 = vsyncadd [#allocation6], %s24
      %s26 = sshll.u32 [#allocation5], 4
      %s27 = int_to_ptr.vmem [resolvable:$true] %s26
      %32 = dma.hbm_to_vmem [thread:$0]  %s1, 512, %s27, [#allocation6], 128, 128, 8
    $region9: #{tpu_custom_call.1} parent=1 // pred_fallthru
      _
    // Predicated region
    $region10: #{tpu_custom_call.1} parent=1 // pred_check
      _
    $region11: #{tpu_custom_call.1} parent=1 // pred_check_branch
      %34 = sbr.rel (0) target = $region13
    $region12: #{tpu_custom_call.1} parent=1 // pred_region
      _
    $region13: #{tpu_custom_call.1} parent=1 // pred_fallthru
      _
    // Predicated region
    $region14: #{tpu_custom_call.1} parent=1 // pred_check
      _
    $region15: #{tpu_custom_call.1} parent=1 // pred_check_branch
      %36 = sbr.rel (0) target = $region17
    $region16: #{tpu_custom_call.1} parent=1 // pred_region
      %37 = dma.done [#allocation3], 128
    $region17: #{tpu_custom_call.1} parent=1 // pred_fallthru
      _
    // Predicated region
    $region18: #{tpu_custom_call.1} parent=1 // pred_check
      _
    $region19: #{tpu_custom_call.1} parent=1 // pred_check_branch
      %39 = sbr.rel (0) target = $region21
    $region20: #{tpu_custom_call.1} parent=1 // pred_region
      %40 = dma.done [#allocation6], 512
    $region21: #{tpu_custom_call.1} parent=1 // pred_fallthru
      _
    %v41 = vld [vmem:[#allocation2] sm:$0xff]
    %v42 = vld [vmem:[#allocation5] sm:$0xff]
    %v43 = vld [vmem:[#allocation5 + $0x8] sm:$0xff]
    %v44 = vld [vmem:[#allocation5 + $0x10] sm:$0xff]
    %v45 = vld [vmem:[#allocation5 + $0x18] sm:$0xff]
    %v46 = vld [vmem:[%s2] sm:$0x1]
    %v48 = vlaneseq
    %v49 = vshrl.u32 %v48, 7
    %v50 = vsub.s32 0, %v49
    %v51 = vrot.slane %v46, %v50
    %vm53 = vcmask 261120
    %v55 = vsel %vm53, %v41, 0
    %57 = vmatprep.subr.mxu0 0.0
    %58 = vmatpush1.msra.mxu0 0.0
    %59 = vmatprep.subr.mxu0 0.0
    %60 = vmatpush1.msra.mxu0 0.0
    %61 = vmatprep.subr.mxu0 0.0
    %62 = vmatpush1.msra.mxu0 0.0
    %63 = vmatprep.subr.mxu0 0.0
    %64 = vmatpush1.msra.mxu0 0.0
    %65 = vmatprep.subr.mxu0 0.0
    %66 = vmatpush1.msra.mxu0 0.0
    %67 = vmatprep.subr.mxu0 0.0
    %68 = vmatpush1.msra.mxu0 0.0
    %69 = vmatprep.subr.mxu0 0.0
    %70 = vmatpush1.msra.mxu0 0.0
    %71 = vmatprep.subr.mxu0 0.0
    %72 = vmatpush1.msra.mxu0 0.0
    %73 = vmatprep.subr.mxu0 0.0
    %74 = vmatpush1.msra.mxu0 0.0
    %75 = vmatprep.subr.mxu0 0.0
    %76 = vmatpush1.msra.mxu0 0.0
    %77 = vmatprep.subr.mxu0 0.0
    %78 = vmatpush1.msra.mxu0 0.0
    %79 = vmatprep.subr.mxu0 0.0
    %80 = vmatpush1.msra.mxu0 0.0
    %81 = vmatprep.subr.mxu0 0.0
    %82 = vmatpush1.msra.mxu0 %v45
    %83 = vmatprep.subr.mxu0 0.0
    %84 = vmatpush1.msra.mxu0 %v44
    %85 = vmatprep.subr.mxu0 0.0
    %86 = vmatpush1.msra.mxu0 %v43
    %87 = vmatprep.subr.mxu0 0.0
    %88 = vmatpush1.msra.mxu0 %v42
    %89 = vmatprep.subr.mxu0 0.0
    %90 = vmatpush2.msra.mxu0 0.0
    %91 = vmatprep.subr.mxu0 0.0
    %92 = vmatpush2.msra.mxu0 0.0
    %93 = vmatprep.subr.mxu0 0.0
    %94 = vmatpush2.msra.mxu0 0.0
    %95 = vmatprep.subr.mxu0 0.0
    %96 = vmatpush2.msra.mxu0 0.0
    %97 = vmatprep.subr.mxu0 0.0
    %98 = vmatpush2.msra.mxu0 0.0
    %99 = vmatprep.subr.mxu0 0.0
    %100 = vmatpush2.msra.mxu0 0.0
    %101 = vmatprep.subr.mxu0 0.0
    %102 = vmatpush2.msra.mxu0 0.0
    %103 = vmatprep.subr.mxu0 0.0
    %104 = vmatpush2.msra.mxu0 0.0
    %105 = vmatprep.subr.mxu0 0.0
    %106 = vmatpush2.msra.mxu0 0.0
    %107 = vmatprep.subr.mxu0 0.0
    %108 = vmatpush2.msra.mxu0 0.0
    %109 = vmatprep.subr.mxu0 0.0
    %110 = vmatpush2.msra.mxu0 0.0
    %111 = vmatprep.subr.mxu0 0.0
    %112 = vmatpush2.msra.mxu0 0.0
    %113 = vmatprep.subr.mxu0 0.0
    %114 = vmatpush2.msra.mxu0 0.0
    %115 = vmatprep.subr.mxu0 0.0
    %116 = vmatpush2.msra.mxu0 0.0
    %117 = vmatprep.subr.mxu0 0.0
    %118 = vmatpush2.msra.mxu0 0.0
    %119 = vmatprep.subr.mxu0 0.0
    %120 = vmatpush2.msra.mxu0 0.0
    %121 = vmatprep.mubr.f32.mxu0 0.0
    %122 = vmatmul.mubr.f32.gmra.mxu0 %v55
    %v123 = vpop.f32.mrf.mxu0
    %v124 = vadd.f32 %v51, %v123
    %v125 = vpop.f32.mrf.mxu0
    %126 = vdwg.mxu0
    %127 = vst [vmem:[#allocation7] sm:$0xff] %v124
    // Predicated region
    $region22: #{tpu_custom_call.1} parent=1 // pred_check
      _
    $region23: #{tpu_custom_call.1} parent=1 // pred_check_branch
      %129 = sbr.rel (0) target = $region25
    $region24: #{tpu_custom_call.1} parent=1 // pred_region
      %s131 = ssub.s32 128, 128
      %132 = vsyncadd [#allocation4], %s131
      %s134 = sshll.u32 [#allocation7], 4
      %s135 = int_to_ptr.vmem [resolvable:$true] %s134
      %137 = dma.vmem_to_hbm [thread:$0]  %s135, 128, %s3, [#allocation4]
    $region25: #{tpu_custom_call.1} parent=1 // pred_fallthru
      _
    // Predicated region
    $region26: #{tpu_custom_call.1} parent=1 // pred_check
      _
    $region27: #{tpu_custom_call.1} parent=1 // pred_check_branch
      %139 = sbr.rel (0) target = $region29
    $region28: #{tpu_custom_call.1} parent=1 // pred_region
      %140 = dma.done [#allocation4], 128
    $region29: #{tpu_custom_call.1} parent=1 // pred_fallthru
      _
    %141 = vsyncpa [#allocation3], 1
    %142 = vsyncpa [#allocation6], 1
    %143 = vsyncpa [#allocation4], 1

</llo_original>
